<compile_context>
chip_gen: v5e
topology: v5e:2x2
jax: 0.10.0
libtpu: 0.0.40
codegen_flags: <defaults>
</compile_context>

<pallas_src>
import jax
import jax.numpy as jnp
from jax.experimental import pallas as pl
from jax.experimental.pallas import tpu as pltpu

_LANE = 128
_BUDGET_BYTES_PER_BUF = 8 * 1024 * 1024  # per-input-buffer cap (safe for v7x VMEM)


def _depthreg_kernel(x_ref, o_ref):
    # x_ref: (1, D, tR, 128) block in VMEM; o_ref: (1, tR, 128)
    D = x_ref.shape[1]
    # Unrolled accumulate over the outer D axis: plain VPU mul-adds, f32 accumulator.
    acc = x_ref[0, 0].astype(jnp.float32)  # weight for channel 0 is 1
    for d in range(1, D):
        acc = acc + x_ref[0, d].astype(jnp.float32) * jnp.float32(d + 1)
    o_ref[0] = acc.astype(o_ref.dtype)


def _choose_spatial_rows(Sr, D, itemsize):
    """Pick tile height (in rows of 128 lanes) along the flattened spatial axis."""
    max_rows = max(8, _BUDGET_BYTES_PER_BUF // (D * _LANE * itemsize))
    if Sr <= max_rows:
        return Sr  # single spatial block (full extent -> exempt from the %8 rule)
    return max(8, (max_rows // 8) * 8)  # multiple of 8 sublanes when tiling


def depthregression_pallas(x, maxdepth):
    """x: [B, D, H, W], D == maxdepth. Returns [B, H, W] (same dtype as x)."""
    B, D, H, W = x.shape
    assert D == maxdepth, "channel dim must equal maxdepth"

    S = H * W
    itemsize = jnp.dtype(x.dtype).itemsize
    Sr = pl.cdiv(S, _LANE)                      # spatial rows of 128 lanes
    tR = _choose_spatial_rows(Sr, D, itemsize)  # rows per tile
    Sr_pad = pl.cdiv(Sr, tR) * tR
    S_pad = Sr_pad * _LANE
    n_s = Sr_pad // tR

    xf = x.reshape(B, D, S)
    if S_pad != S:
        xf = jnp.pad(xf, ((0, 0), (0, 0), (0, S_pad - S)))
    x4 = xf.reshape(B, D, Sr_pad, _LANE)

    cost = pl.CostEstimate(
        flops=2 * B * D * S_pad,
        transcendentals=0,
        bytes_accessed=itemsize * (B * D * S_pad + B * S_pad),
    )

    out = pl.pallas_call(
        _depthreg_kernel,
        out_shape=jax.ShapeDtypeStruct((B, Sr_pad, _LANE), x.dtype),
        grid_spec=pltpu.PrefetchScalarGridSpec(
            num_scalar_prefetch=0,
            grid=(B, n_s),
            in_specs=[
                pl.BlockSpec((1, D, tR, _LANE), lambda b, s: (b, 0, s, 0)),
            ],
            out_specs=pl.BlockSpec((1, tR, _LANE), lambda b, s: (b, s, 0)),
        ),
        compiler_params=pltpu.CompilerParams(
            dimension_semantics=("parallel", "parallel"),
            vmem_limit_bytes=48 << 20,  # > v5e's 16 MiB default, < v7x's 64 MiB physical
        ),
        cost_estimate=cost,
    )(x4)

    return out.reshape(B, S_pad)[:, :S].reshape(B, H, W)


if __name__ == "__main__":
    key = jax.random.PRNGKey(0)
    B, maxdepth, H, W = 2, 4, 16, 16  # x: [B, D, H, W] with D == maxdepth
    x = jax.random.uniform(key, (B, maxdepth, H, W), dtype=jnp.float32)

    out = depthregression_pallas(x, maxdepth)
    out = jax.block_until_ready(out)

    # reference check in plain JAX (matches torch.arange(1, 1+maxdepth) broadcast)
    disp_ref = jnp.arange(1, 1 + maxdepth, dtype=jnp.float32)[None, :, None, None]
    ref = jnp.sum(x * disp_ref, axis=1)
    assert out.shape == (B, H, W)
    assert jnp.allclose(out, ref, atol=1e-5, rtol=1e-5)

    print("KERNEL_OK")
</pallas_src>

<mosaic_0001>
module attributes {stable_mosaic.version = 11 : i64} {
  func.func @_depthreg_kernel(%arg0: i32, %arg1: i32, %arg2: memref<1x4x2x128xf32, #tpu.memory_space<vmem>>, %arg3: memref<1x2x128xf32, #tpu.memory_space<vmem>>) attributes {dimension_semantics = [#tpu.dimension_semantics<parallel>, #tpu.dimension_semantics<parallel>], iteration_bounds = array<i64: 2, 1>, scalar_prefetch = 0 : i64, scratch_operands = 0 : i64, tpu.core_type = #tpu.core_type<tc>, window_params = [{transform_indices = @transform_0, window_bounds = array<i64: 1, 4, 2, 128>}, {transform_indices = @transform_1, window_bounds = array<i64: 1, 2, 128>}]} {
    %c0 = arith.constant 0 : index
    %c0_0 = arith.constant 0 : index
    %c0_1 = arith.constant 0 : index
    %c0_2 = arith.constant 0 : index
    %0 = vector.load %arg2[%c0, %c0_0, %c0_1, %c0_2] : memref<1x4x2x128xf32, #tpu.memory_space<vmem>>, vector<1x1x2x128xf32>
    %1 = vector.shape_cast %0 : vector<1x1x2x128xf32> to vector<2x128xf32>
    %c0_3 = arith.constant 0 : index
    %c1 = arith.constant 1 : index
    %c0_4 = arith.constant 0 : index
    %c0_5 = arith.constant 0 : index
    %2 = vector.load %arg2[%c0_3, %c1, %c0_4, %c0_5] : memref<1x4x2x128xf32, #tpu.memory_space<vmem>>, vector<1x1x2x128xf32>
    %3 = vector.shape_cast %2 : vector<1x1x2x128xf32> to vector<2x128xf32>
    %cst = arith.constant 2.000000e+00 : f32
    %4 = vector.broadcast %cst : f32 to vector<2x128xf32>
    %5 = arith.mulf %3, %4 : vector<2x128xf32>
    %6 = arith.addf %1, %5 : vector<2x128xf32>
    %c0_6 = arith.constant 0 : index
    %c2 = arith.constant 2 : index
    %c0_7 = arith.constant 0 : index
    %c0_8 = arith.constant 0 : index
    %7 = vector.load %arg2[%c0_6, %c2, %c0_7, %c0_8] : memref<1x4x2x128xf32, #tpu.memory_space<vmem>>, vector<1x1x2x128xf32>
    %8 = vector.shape_cast %7 : vector<1x1x2x128xf32> to vector<2x128xf32>
    %cst_9 = arith.constant 3.000000e+00 : f32
    %9 = vector.broadcast %cst_9 : f32 to vector<2x128xf32>
    %10 = arith.mulf %8, %9 : vector<2x128xf32>
    %11 = arith.addf %6, %10 : vector<2x128xf32>
    %c0_10 = arith.constant 0 : index
    %c3 = arith.constant 3 : index
    %c0_11 = arith.constant 0 : index
    %c0_12 = arith.constant 0 : index
    %12 = vector.load %arg2[%c0_10, %c3, %c0_11, %c0_12] : memref<1x4x2x128xf32, #tpu.memory_space<vmem>>, vector<1x1x2x128xf32>
    %13 = vector.shape_cast %12 : vector<1x1x2x128xf32> to vector<2x128xf32>
    %cst_13 = arith.constant 4.000000e+00 : f32
    %14 = vector.broadcast %cst_13 : f32 to vector<2x128xf32>
    %15 = arith.mulf %13, %14 : vector<2x128xf32>
    %16 = arith.addf %11, %15 : vector<2x128xf32>
    %c0_14 = arith.constant 0 : index
    %c0_15 = arith.constant 0 : index
    %c0_16 = arith.constant 0 : index
    %17 = vector.load %arg3[%c0_14, %c0_15, %c0_16] : memref<1x2x128xf32, #tpu.memory_space<vmem>>, vector<1x2x128xf32>
    %18 = vector.shape_cast %17 : vector<1x2x128xf32> to vector<2x128xf32>
    %19 = vector.shape_cast %16 : vector<2x128xf32> to vector<1x2x128xf32>
    tpu.vector_store %arg3[%c0_14, %c0_15, %c0_16], %19 {strides = array<i32>} : memref<1x2x128xf32, #tpu.memory_space<vmem>>, vector<1x2x128xf32>,
    return
  }
  func.func @transform_0(%arg0: i32, %arg1: i32) -> (i32, i32, i32, i32) {
    %c0_i32 = arith.constant 0 : i32
    %c0_i32_0 = arith.constant 0 : i32
    %c0_i32_1 = arith.constant 0 : i32
    return %arg0, %c0_i32, %arg1, %c0_i32_0 : i32, i32, i32, i32
  }
  func.func @transform_1(%arg0: i32, %arg1: i32) -> (i32, i32, i32) {
    %c0_i32 = arith.constant 0 : i32
    %c0_i32_0 = arith.constant 0 : i32
    return %arg0, %arg1, %c0_i32 : i32, i32, i32
  }
}

</mosaic_0001>

<llo_original>
// kernel: tpu_custom_call.1
$region0: #{tpu_custom_call.1}
  #allocation0 [shape = 'u32[]', space=smem, size = 0x4, offset = 0x4, fixed_abs, tag = 'smem constant byte address 0x4 - core index']
  #allocation1 [shape = 'u32[72,128]{1,0:T(1,128)}', space=vmem, size = 0x9000, scoped, tag = 'internal scratch']
  %s0 = inlined_call_operand.hbm [shape: f32[2,4,2,128], index: 0, kind: input, shape index: {}]
  %s1 = inlined_call_operand.hbm [shape: f32[2,2,128], index: 1, kind: output, shape index: {}]
  %s2 = sld [smem:[#allocation0]]
  $region41: #{tpu_custom_call.1} parent=0
    _
  %s4 = ssub.s32 1, %s2
  %s5 = scalar_select 0, %s4, %s2
  $region1: #{tpu_custom_call.1} parent=0
    #allocation2 [shape = 'u8[8192]{0}', space=vmem, size = 0x2000, scoped, tag = 'input window, operand 0']
    #allocation3 [shape = 's32[2]{0}', space=sflag, size = 0x8, scoped, tag = 'scoped memory for tpu_custom_call.1']
    #allocation4 [shape = 's32[2]{0}', space=sflag, size = 0x8, scoped, tag = 'scoped memory for tpu_custom_call.1']
    #allocation5 [shape = 'u8[2048]{0}', space=vmem, size = 0x800, scoped, tag = 'output window, operand 0']
    %6 = vsyncpa [#allocation3], 0
    %s7 = scalar_lea.sflag [#allocation3], 1
    %8 = vsyncpa %s7, 0
    %9 = vsyncpa [#allocation4], 0
    %s10 = scalar_lea.sflag [#allocation4], 1
    %11 = vsyncpa %s10, 0
    loop: start=0, step=1, limit=4
    $region2: #{tpu_custom_call.1} parent=1 // loop_pre_header
      _
    $region3: #{tpu_custom_call.1} parent=1 // loop_header
      %s13 = sphi 0, %s17
      %p14 = scmp.ge.s32.totalorder %s13, 4
      %s20 = sphi 0, %s32
      %s21 = sphi 0, %s28
      %s22 = sphi 0, %s20
      %s23 = sphi 0, %s21
      %s24 = sphi 0, %s22
      %s25 = sphi 0, %s23
      %s37 = sphi 0, %s39
      %s40 = sphi 0, %s37
      %s41 = sphi 0, %s40
      %s57 = sphi 0, %s41
      %s65 = sphi 0, %s67
      %s68 = sphi 0, %s65
      %s69 = sphi 0, %s68
      %s85 = sphi 0, %s69
    $region4: #{tpu_custom_call.1} parent=1 // loop_header_branch
      %16 = sbr.rel (%p14) target = $region8
    $region5: #{tpu_custom_call.1} parent=1 // loop_body
      %s18 = ssub.s32 %s13, 1
      %s19 = ssub.s32 %s13, 2
      %s26 = sadd.s32 1, %s21
      %p27 = scmp.ge.s32.totalorder %s26, 1
      %s28 = scalar_select %p27, 0, %s26
      %s29 = sadd.s32 1, %s20
      %s30 = scalar_select %p27, %s29, %s20
      %p31 = scmp.ge.s32.totalorder %s30, 2
      %s32 = scalar_select %p31, 0, %s30
      %s33 = ssub.s32 %s20, %s32
      %s34 = ssub.s32 %s21, %s28
      %s35 = sor.u32 %s33, %s34
      %p36 = scmp.eq.s32.totalorder %s35, 0
      %s38 = sadd.s32 %s37, 1
      %s39 = scalar_select %p36, %s37, %s38
      %p42 = pneg %p36
      %p43 = scmp.eq.s32.totalorder %s13, 1
      %p44 = por %p42, %p43
      %p45 = scmp.ne.s32.totalorder %s37, %s40
      %p46 = scmp.eq.s32.totalorder %s13, 0
      %p47 = por %p45, %p46
      %p48 = scmp.ne.s32.totalorder %s37, %s40
      %p49 = scmp.eq.s32.totalorder %s18, 1
      %p50 = por %p48, %p49
      %p51 = scmp.ne.s32.totalorder %s40, %s41
      %p52 = scmp.eq.s32.totalorder %s18, 0
      %p53 = por %p51, %p52
      %p54 = scmp.ne.s32.totalorder %s40, %s41
      %p55 = scmp.eq.s32.totalorder %s19, 1
      %p56 = por %p54, %p55
      %p58 = scmp.ne.s32.totalorder %s41, %s57
      %p59 = scmp.eq.s32.totalorder %s19, 0
      %p60 = por %p58, %p59
      %s61 = ssub.s32 %s20, %s32
      %s62 = ssub.s32 %s21, %s28
      %s63 = sor.u32 %s61, %s62
      %p64 = scmp.eq.s32.totalorder %s63, 0
      %s66 = sadd.s32 %s65, 1
      %s67 = scalar_select %p64, %s65, %s66
      %p70 = pneg %p64
      %p71 = scmp.eq.s32.totalorder %s13, 1
      %p72 = por %p70, %p71
      %p73 = scmp.ne.s32.totalorder %s65, %s68
      %p74 = scmp.eq.s32.totalorder %s13, 0
      %p75 = por %p73, %p74
      %p76 = scmp.ne.s32.totalorder %s65, %s68
      %p77 = scmp.eq.s32.totalorder %s18, 1
      %p78 = por %p76, %p77
      %p79 = scmp.ne.s32.totalorder %s68, %s69
      %p80 = scmp.eq.s32.totalorder %s18, 0
      %p81 = por %p79, %p80
      %p82 = scmp.ne.s32.totalorder %s68, %s69
      %p83 = scmp.eq.s32.totalorder %s19, 1
      %p84 = por %p82, %p83
      %p86 = scmp.ne.s32.totalorder %s69, %s85
      %p87 = scmp.eq.s32.totalorder %s19, 0
      %p88 = por %p86, %p87
      %p89 = scmp.le.s32.totalorder 1, %s13
      %p90 = scmp.lt.s32.totalorder %s13, 3
      %p91 = pnand %p89, %p90
      %p92 = pneg %p91
      // Predicated region
      $region9: #{tpu_custom_call.1} parent=5 // pred_check
        _
      $region10: #{tpu_custom_call.1} parent=5 // pred_check_branch
        %94 = sbr.rel (%p91) target = $region12
      $region11: #{tpu_custom_call.1} parent=5 // pred_region
        %s95 = ssub.s32 %s13, 1
      $region12: #{tpu_custom_call.1} parent=5 // pred_fallthru
        _
      %p96 = scmp.lt.s32.totalorder %s13, 2
      // Predicated region
      $region13: #{tpu_custom_call.1} parent=5 // pred_check
        %p97 = pneg %p96
      $region14: #{tpu_custom_call.1} parent=5 // pred_check_branch
        %99 = sbr.rel (%p97) target = $region16
      $region15: #{tpu_custom_call.1} parent=5 // pred_region
        // Predicated region
        $region17: #{tpu_custom_call.1} parent=15 // pred_check
          %p100 = pneg %p47
        $region18: #{tpu_custom_call.1} parent=15 // pred_check_branch
          %102 = sbr.rel (%p100) target = $region20
        $region19: #{tpu_custom_call.1} parent=15 // pred_region
          %s103 = sand.u32 %s37, 1
          %s104 = scalar_lea.sflag [#allocation3], %s103
          %s105 = sand.u32 %s37, 1
          %s106 = smul.addr %s105, 8
          %s107 = scalar_lea.vmem [#allocation2], %s106
          %109 = vsyncadd %s104, 0
          %s110 = smul.addr %s20, 4
          %s111 = sadd.s32 %s21, %s110
          %s112 = smul.addr %s111, 2
          %s113 = scalar_lea.hbm %s0, %s112
          %s114 = sshll.u32 %s113, 4
          %s115 = int_to_ptr.hbm [resolvable:$true] %s114
          %s116 = sshll.u32 %s107, 4
          %s117 = int_to_ptr.vmem [resolvable:$true] %s116
          %122 = dma.hbm_to_vmem [thread:$0]  %s115, 128, %s117, %s104, 32, 32, 2
        $region20: #{tpu_custom_call.1} parent=15 // pred_fallthru
          _
      $region16: #{tpu_custom_call.1} parent=5 // pred_fallthru
        _
      %p123 = scmp.le.s32.totalorder 1, %s13
      %p124 = scmp.lt.s32.totalorder %s13, 3
      %p125 = pnand %p123, %p124
      %p126 = pneg %p125
      // Predicated region
      $region21: #{tpu_custom_call.1} parent=5 // pred_check
        _
      $region22: #{tpu_custom_call.1} parent=5 // pred_check_branch
        %128 = sbr.rel (%p125) target = $region24
      $region23: #{tpu_custom_call.1} parent=5 // pred_region
        %s129 = ssub.s32 %s13, 1
        %s130 = sand.u32 %s40, 1
        %s131 = scalar_lea.sflag [#allocation3], %s130
        %s132 = sand.u32 %s40, 1
        %s133 = smul.addr %s132, 8
        %s134 = scalar_lea.vmem [#allocation2], %s133
        // Predicated region
        $region25: #{tpu_custom_call.1} parent=23 // pred_check
          %p135 = pneg %p53
        $region26: #{tpu_custom_call.1} parent=23 // pred_check_branch
          %137 = sbr.rel (%p135) target = $region28
        $region27: #{tpu_custom_call.1} parent=23 // pred_region
          %139 = dma.done %s131, 128
        $region28: #{tpu_custom_call.1} parent=23 // pred_fallthru
          _
        %s140 = sand.u32 %s40, 1
        %s141 = scalar_lea.sflag [#allocation3], %s140
        %s142 = sand.u32 %s40, 1
        %s143 = smul.addr %s142, 8
        %s144 = scalar_lea.vmem [#allocation2], %s143
        %p145 = pneg %p53
        %p146 = pneg %p50
        %p147 = pneg %p81
        %p148 = pneg %p78
        %s149 = sand.u32 %s68, 1
        %s150 = scalar_lea.sflag [#allocation4], %s149
        %s151 = sand.u32 %s68, 1
        %s152 = smul.addr %s151, 2
        %s153 = scalar_lea.vmem [#allocation5], %s152
        %v154 = vld [vmem:[%s134] sm:$0x3]
        %s155 = scalar_lea.vmem %s134, 2 [#allocation2]
        %v156 = vld [vmem:[%s155] sm:$0x3]
        %v157 = vmul.f32 %v156, 2.0
        %v158 = vadd.f32 %v154, %v157
        %s159 = scalar_lea.vmem %s134, 4 [#allocation2]
        %v160 = vld [vmem:[%s159] sm:$0x3]
        %v161 = vmul.f32 %v160, 3.0
        %v162 = vadd.f32 %v158, %v161
        %s163 = scalar_lea.vmem %s134, 6 [#allocation2]
        %v164 = vld [vmem:[%s163] sm:$0x3]
        %v165 = vmul.f32 %v164, 4.0
        %v166 = vadd.f32 %v162, %v165
        %167 = vst [vmem:[%s153] sm:$0x3] %v166
        %s168 = sand.u32 %s68, 1
        %s169 = scalar_lea.sflag [#allocation4], %s168
        %s170 = sand.u32 %s68, 1
        %s171 = smul.addr %s170, 2
        %s172 = scalar_lea.vmem [#allocation5], %s171
        // Predicated region
        $region29: #{tpu_custom_call.1} parent=23 // pred_check
          %p173 = pneg %p78
        $region30: #{tpu_custom_call.1} parent=23 // pred_check_branch
          %175 = sbr.rel (%p173) target = $region32
        $region31: #{tpu_custom_call.1} parent=23 // pred_region
          %177 = vsyncadd %s169, 0
          %s178 = sadd.s32 %s23, %s22
          %s179 = smul.addr %s178, 2
          %s180 = scalar_lea.hbm %s1, %s179
          %s182 = sshll.u32 %s172, 4
          %s183 = int_to_ptr.vmem [resolvable:$true] %s182
          %s184 = sshll.u32 %s180, 4
          %s185 = int_to_ptr.hbm [resolvable:$true] %s184
          %187 = dma.vmem_to_hbm [thread:$0]  %s183, 32, %s185, %s169
        $region32: #{tpu_custom_call.1} parent=23 // pred_fallthru
          _
      $region24: #{tpu_custom_call.1} parent=5 // pred_fallthru
        _
      %p188 = scmp.le.s32.totalorder 2, %s13
      // Predicated region
      $region33: #{tpu_custom_call.1} parent=5 // pred_check
        %p189 = pneg %p188
      $region34: #{tpu_custom_call.1} parent=5 // pred_check_branch
        %191 = sbr.rel (%p189) target = $region36
      $region35: #{tpu_custom_call.1} parent=5 // pred_region
        %s192 = ssub.s32 %s13, 2
        // Predicated region
        $region37: #{tpu_custom_call.1} parent=35 // pred_check
          %p193 = pneg %p84
        $region38: #{tpu_custom_call.1} parent=35 // pred_check_branch
          %195 = sbr.rel (%p193) target = $region40
        $region39: #{tpu_custom_call.1} parent=35 // pred_region
          %s196 = sand.u32 %s69, 1
          %s197 = scalar_lea.sflag [#allocation4], %s196
          %s198 = sand.u32 %s69, 1
          %s199 = smul.addr %s198, 2
          %s200 = scalar_lea.vmem [#allocation5], %s199
          %202 = dma.done %s197, 32
        $region40: #{tpu_custom_call.1} parent=35 // pred_fallthru
          _
      $region36: #{tpu_custom_call.1} parent=5 // pred_fallthru
        _
    $region6: #{tpu_custom_call.1} parent=1 // loop_footer
      %s17 = sadd.s32 1, %s13
    $region7: #{tpu_custom_call.1} parent=1 // loop_footer_branch
      %12 = sbr.rel target = $region3
    $region8: #{tpu_custom_call.1} parent=1 // loop_exit
      _
    %203 = vsyncpa [#allocation3], 1
    %s204 = scalar_lea.sflag [#allocation3], 1
    %205 = vsyncpa %s204, 1
    %206 = vsyncpa [#allocation4], 1
    %s207 = scalar_lea.sflag [#allocation4], 1
    %208 = vsyncpa %s207, 1

</llo_original>
